<compile_context>
chip_gen: v6e
topology: v6e:2x2x1
jax: 0.10.0
libtpu: 0.0.40
codegen_flags: <defaults>
</compile_context>

<pallas_src>
import math

import jax
import jax.numpy as jnp
from jax.experimental import pallas as pl
from jax.experimental.pallas import tpu as pltpu


def _round_up(x, m):
    return ((x + m - 1) // m) * m


# Safe scoped-VMEM request on v5e (128 MiB phys), v6e (128), v7x (64).
_VMEM_LIMIT_BYTES = 32 * 1024 * 1024
# Headroom under the scoped limit for choosing the fused path.
_FUSED_VMEM_BUDGET = 24 * 1024 * 1024


# ----------------------------------------------------------------------------
# Fused kernel: out = adj @ (X @ W) + bias, X @ W cached in VMEM per batch
# ----------------------------------------------------------------------------
def _fused_kernel(x_ref, w_ref, adj_ref, b_ref, o_ref, sup_ref, acc_ref):
    # x_ref:   (N_p, F_in_p)        full node features of the current batch
    # w_ref:   (F_in_p, F_out_p)
    # adj_ref: (TM, TK)
    # b_ref:   (1, F_out_p)         f32
    # o_ref:   (TM, F_out_p)
    # sup_ref: VMEM (N_p, F_out_p)  cached support = X @ W (compute dtype)
    # acc_ref: VMEM (TM, F_out_p)   f32 accumulator
    i = pl.program_id(1)
    k = pl.program_id(2)
    tk = adj_ref.shape[1]

    @pl.when(jnp.logical_and(i == 0, k == 0))
    def _():
        # Once per batch: one big MXU matmul fills the support cache.
        sup_ref[...] = jnp.dot(
            x_ref[...], w_ref[...], preferred_element_type=jnp.float32
        ).astype(sup_ref.dtype)

    @pl.when(k == 0)
    def _():
        acc_ref[...] = jnp.zeros_like(acc_ref)

    off = pl.multiple_of(k * tk, tk)  # tk is a multiple of 128 -> aligned slice
    acc_ref[...] += jnp.dot(
        adj_ref[...], sup_ref[pl.ds(off, tk), :], preferred_element_type=jnp.float32
    )

    @pl.when(k == pl.num_programs(2) - 1)
    def _():
        # Bias added exactly once per output tile, in the finalize step.
        o_ref[...] = (acc_ref[...] + b_ref[...]).astype(o_ref.dtype)


# ----------------------------------------------------------------------------
# Two-stage fallback (only used when the fused path would exceed VMEM budget)
# ----------------------------------------------------------------------------
def _support_kernel(x_ref, w_ref, o_ref):
    # x_ref: (TM1, F_in_p)   w_ref: (F_in_p, F_out_p)   o_ref: (TM1, F_out_p)
    o_ref[...] = jnp.dot(
        x_ref[...], w_ref[...], preferred_element_type=jnp.float32
    ).astype(o_ref.dtype)


def _aggregate_kernel(adj_ref, sup_ref, b_ref, o_ref, acc_ref):
    # adj_ref: (TM, TK)  sup_ref: (TK, F_out_p)  b_ref: (1, F_out_p)
    k = pl.program_id(2)

    @pl.when(k == 0)
    def _():
        acc_ref[...] = jnp.zeros_like(acc_ref)

    acc_ref[...] += jnp.dot(
        adj_ref[...], sup_ref[...], preferred_element_type=jnp.float32
    )

    @pl.when(k == pl.num_programs(2) - 1)
    def _():
        o_ref[...] = (acc_ref[...] + b_ref[...]).astype(o_ref.dtype)


def _two_stage_path(xp, adjp, wp, bp, *, B, N_p, F_in_p, F_out_p, TM, TK,
                    compute_dtype, out_dtype):
    cs = jnp.dtype(compute_dtype).itemsize
    TM1 = TK  # node-row tile for stage 1

    support = pl.pallas_call(
        _support_kernel,
        out_shape=jax.ShapeDtypeStruct((B, N_p, F_out_p), compute_dtype),
        grid_spec=pltpu.PrefetchScalarGridSpec(
            num_scalar_prefetch=0,
            grid=(B, N_p // TM1),
            in_specs=[
                pl.BlockSpec((pl.Squeezed(), TM1, F_in_p), lambda b, i: (b, i, 0)),
                pl.BlockSpec((F_in_p, F_out_p), lambda b, i: (0, 0)),
            ],
            out_specs=pl.BlockSpec((pl.Squeezed(), TM1, F_out_p), lambda b, i: (b, i, 0)),
        ),
        compiler_params=pltpu.CompilerParams(
            dimension_semantics=("parallel", "parallel"),
            vmem_limit_bytes=_VMEM_LIMIT_BYTES,
        ),
        cost_estimate=pl.CostEstimate(
            flops=2 * B * N_p * F_in_p * F_out_p,
            transcendentals=0,
            bytes_accessed=cs * (B * N_p * F_in_p + F_in_p * F_out_p + B * N_p * F_out_p),
        ),
    )(xp, wp)

    return pl.pallas_call(
        _aggregate_kernel,
        out_shape=jax.ShapeDtypeStruct((B, N_p, F_out_p), out_dtype),
        grid_spec=pltpu.PrefetchScalarGridSpec(
            num_scalar_prefetch=0,
            grid=(B, N_p // TM, N_p // TK),
            in_specs=[
                pl.BlockSpec((pl.Squeezed(), TM, TK), lambda b, i, k: (b, i, k)),
                pl.BlockSpec((pl.Squeezed(), TK, F_out_p), lambda b, i, k: (b, k, 0)),
                pl.BlockSpec((1, F_out_p), lambda b, i, k: (0, 0)),
            ],
            out_specs=pl.BlockSpec((pl.Squeezed(), TM, F_out_p), lambda b, i, k: (b, i, 0)),
            scratch_shapes=[pltpu.VMEM((TM, F_out_p), jnp.float32)],
        ),
        compiler_params=pltpu.CompilerParams(
            dimension_semantics=("parallel", "parallel", "arbitrary"),
            vmem_limit_bytes=_VMEM_LIMIT_BYTES,
        ),
        cost_estimate=pl.CostEstimate(
            flops=2 * B * N_p * N_p * F_out_p,
            transcendentals=0,
            bytes_accessed=(
                cs * (B * N_p * N_p + B * N_p * F_out_p)
                + 4 * F_out_p
                + jnp.dtype(out_dtype).itemsize * B * N_p * F_out_p
            ),
        ),
    )(adjp, support, bp)


# ----------------------------------------------------------------------------
# Public wrapper
# ----------------------------------------------------------------------------
def graph_convolution(x, adj, weight, bias=None, *, compute_dtype=jnp.float32,
                      _force_two_stage=False):
    """Pallas GCN layer forward.

    x:      [B, N, F_in]  float32
    adj:    [B, N, N]     float32
    weight: [F_in, F_out] float32
    bias:   [F_out] or None
    compute_dtype: dtype fed to the MXU (f32 or bf16); accumulation is f32.
    returns [B, N, F_out] in x.dtype
    """
    B, N, F_in = x.shape
    F_out = weight.shape[1]
    assert weight.shape[0] == F_in
    assert adj.shape == (B, N, N)

    out_dtype = x.dtype
    cs = jnp.dtype(compute_dtype).itemsize
    osz = jnp.dtype(out_dtype).itemsize

    # --- lane-dense padding -------------------------------------------------
    N_p = _round_up(N, 128)
    F_in_p = _round_up(F_in, 128)
    F_out_p = _round_up(F_out, 128)

    # Tile sizes: TK (adj contraction) multiple of 128, TM (node rows) of 128.
    TK = next(t for t in (512, 256, 128) if N_p % t == 0)
    TM = next(t for t in (256, 128) if N_p % t == 0)

    xp = jnp.pad(x, ((0, 0), (0, N_p - N), (0, F_in_p - F_in))).astype(compute_dtype)
    adjp = jnp.pad(adj, ((0, 0), (0, N_p - N), (0, N_p - N))).astype(compute_dtype)
    wp = jnp.pad(weight, ((0, F_in_p - F_in), (0, F_out_p - F_out))).astype(compute_dtype)

    if bias is None:
        # bias=False path: fused add of zeros in the finalize step (no extra kernel).
        bp = jnp.zeros((1, F_out_p), dtype=jnp.float32)
    else:
        bp = jnp.pad(bias.astype(jnp.float32), (0, F_out_p - F_out)).reshape(1, F_out_p)

    # Estimated VMEM footprint of the fused path (double-buffered pipeline
    # inputs/outputs + persistent scratch).
    fused_vmem = (
        cs * (2 * N_p * F_in_p + 2 * F_in_p * F_out_p + 2 * TM * TK + N_p * F_out_p)
        + 4 * (2 * F_out_p + TM * F_out_p)
        + osz * 2 * TM * F_out_p
    )

    if _force_two_stage or fused_vmem > _FUSED_VMEM_BUDGET:
        out_p = _two_stage_path(
            xp, adjp, wp, bp, B=B, N_p=N_p, F_in_p=F_in_p, F_out_p=F_out_p,
            TM=TM, TK=TK, compute_dtype=compute_dtype, out_dtype=out_dtype,
        )
    else:
        out_p = pl.pallas_call(
            _fused_kernel,
            out_shape=jax.ShapeDtypeStruct((B, N_p, F_out_p), out_dtype),
            grid_spec=pltpu.PrefetchScalarGridSpec(
                num_scalar_prefetch=0,
                grid=(B, N_p // TM, N_p // TK),
                in_specs=[
                    # Full X_b per batch; block index depends only on b -> fetched once.
                    pl.BlockSpec((pl.Squeezed(), N_p, F_in_p), lambda b, i, k: (b, 0, 0)),
                    pl.BlockSpec((F_in_p, F_out_p), lambda b, i, k: (0, 0)),
                    pl.BlockSpec((pl.Squeezed(), TM, TK), lambda b, i, k: (b, i, k)),
                    pl.BlockSpec((1, F_out_p), lambda b, i, k: (0, 0)),
                ],
                out_specs=pl.BlockSpec(
                    (pl.Squeezed(), TM, F_out_p), lambda b, i, k: (b, i, 0)
                ),
                scratch_shapes=[
                    pltpu.VMEM((N_p, F_out_p), compute_dtype),   # support cache
                    pltpu.VMEM((TM, F_out_p), jnp.float32),      # f32 accumulator
                ],
            ),
            compiler_params=pltpu.CompilerParams(
                dimension_semantics=("parallel", "arbitrary", "arbitrary"),
                vmem_limit_bytes=_VMEM_LIMIT_BYTES,
            ),
            cost_estimate=pl.CostEstimate(
                flops=2 * B * N_p * F_out_p * (F_in_p + N_p),
                transcendentals=0,
                bytes_accessed=(
                    cs * (B * N_p * F_in_p + F_in_p * F_out_p + B * N_p * N_p)
                    + 4 * F_out_p
                    + osz * B * N_p * F_out_p
                ),
            ),
        )(xp, wp, adjp, bp)

    return out_p[:, :N, :F_out]


def init_params(key, in_features, out_features, bias=True):
    """Deterministic re-implementation of GraphConvolution.reset_parameters."""
    stdv = 1.0 / math.sqrt(out_features)
    kw, kb = jax.random.split(key)
    weight = jax.random.uniform(
        kw, (in_features, out_features), dtype=jnp.float32, minval=-stdv, maxval=stdv
    )
    b = (
        jax.random.uniform(kb, (out_features,), dtype=jnp.float32, minval=-stdv, maxval=stdv)
        if bias
        else None
    )
    return weight, b


if __name__ == "__main__":
    key = jax.random.PRNGKey(0)
    k_x, k_adj, k_p = jax.random.split(key, 3)

    B, N, F_IN, F_OUT = 2, 8, 16, 32

    x = jax.random.normal(k_x, (B, N, F_IN), dtype=jnp.float32)
    # Row-normalized random adjacency (values don't need to be a real graph).
    adj_raw = jax.random.uniform(k_adj, (B, N, N), dtype=jnp.float32)
    adj = adj_raw / jnp.sum(adj_raw, axis=-1, keepdims=True)

    weight, bias = init_params(k_p, F_IN, F_OUT, bias=True)

    # Reference (plain JAX).
    ref = jnp.einsum("bij,bjf->bif", adj, x @ weight) + bias

    # Fused f32 compute path: tight tolerance.
    out = jax.block_until_ready(graph_convolution(x, adj, weight, bias))
    assert out.shape == (B, N, F_OUT)
    assert jnp.allclose(out, ref, atol=1e-4, rtol=1e-4), "fused f32 mismatch vs reference"

    # Fused bf16 compute path (bandwidth / bf16-MXU optimization): loose tolerance.
    out_bf16 = jax.block_until_ready(
        graph_convolution(x, adj, weight, bias, compute_dtype=jnp.bfloat16)
    )
    assert out_bf16.shape == (B, N, F_OUT)
    assert jnp.allclose(out_bf16, ref, atol=3e-2, rtol=3e-2), "fused bf16 mismatch vs reference"

    # Two-stage fallback path (used for very large graphs): keep it correct too.
    out_2s = jax.block_until_ready(
        graph_convolution(x, adj, weight, bias, _force_two_stage=True)
    )
    assert jnp.allclose(out_2s, ref, atol=1e-4, rtol=1e-4), "two-stage mismatch vs reference"

    # bias=None path.
    ref_nb = jnp.einsum("bij,bjf->bif", adj, x @ weight)
    out_nb = jax.block_until_ready(graph_convolution(x, adj, weight, None))
    assert jnp.allclose(out_nb, ref_nb, atol=1e-4, rtol=1e-4), "no-bias mismatch vs reference"

    print("KERNEL_OK")
</pallas_src>

<mosaic_0001>
module attributes {stable_mosaic.version = 11 : i64} {
  func.func @_fused_kernel(%arg0: i32, %arg1: i32, %arg2: i32, %arg3: memref<1x128x128xf32, #tpu.memory_space<vmem>>, %arg4: memref<128x128xf32, #tpu.memory_space<vmem>>, %arg5: memref<1x128x128xf32, #tpu.memory_space<vmem>>, %arg6: memref<1x128xf32, #tpu.memory_space<vmem>>, %arg7: memref<1x128x128xf32, #tpu.memory_space<vmem>>, %arg8: memref<128x128xf32, #tpu.memory_space<vmem>>, %arg9: memref<128x128xf32, #tpu.memory_space<vmem>>) attributes {dimension_semantics = [#tpu.dimension_semantics<parallel>, #tpu.dimension_semantics<arbitrary>, #tpu.dimension_semantics<arbitrary>], iteration_bounds = array<i64: 2, 1, 1>, scalar_prefetch = 0 : i64, scratch_operands = 2 : i64, tpu.core_type = #tpu.core_type<tc>, window_params = [{transform_indices = @transform_0, window_bounds = array<i64: 1, 128, 128>}, {pipeline_mode = #tpu.pipeline_mode<synchronous>, transform_indices = @transform_1, window_bounds = array<i64: 128, 128>}, {transform_indices = @transform_2, window_bounds = array<i64: 1, 128, 128>}, {pipeline_mode = #tpu.pipeline_mode<synchronous>, transform_indices = @transform_3, window_bounds = array<i64: 1, 128>}, {transform_indices = @transform_4, window_bounds = array<i64: 1, 128, 128>}]} {
    %c0_i32 = arith.constant 0 : i32
    %0 = arith.cmpi eq, %arg1, %c0_i32 : i32
    %c0_i32_0 = arith.constant 0 : i32
    %1 = arith.cmpi eq, %arg2, %c0_i32_0 : i32
    %2 = arith.andi %0, %1 : i1
    %3 = arith.extui %2 : i1 to i32
    %c0_i32_1 = arith.constant 0 : i32
    %4 = arith.cmpi ne, %3, %c0_i32_1 : i32
    scf.if %4 {
      %c0_13 = arith.constant 0 : index
      %c0_14 = arith.constant 0 : index
      %c0_15 = arith.constant 0 : index
      %21 = vector.load %arg3[%c0_13, %c0_14, %c0_15] : memref<1x128x128xf32, #tpu.memory_space<vmem>>, vector<1x128x128xf32>
      %22 = vector.shape_cast %21 : vector<1x128x128xf32> to vector<128x128xf32>
      %c0_16 = arith.constant 0 : index
      %c0_17 = arith.constant 0 : index
      %23 = vector.load %arg4[%c0_16, %c0_17] : memref<128x128xf32, #tpu.memory_space<vmem>>, vector<128x128xf32>
      %cst_18 = arith.constant dense<0.000000e+00> : vector<128x128xf32>
      %24 = tpu.matmul %22, %23, %cst_18 {dimension_numbers = #tpu.dot_dimension_numbers<[1], [0], [0], [1], [0, 0, 1, 1], [], []>} : vector<128x128xf32>, vector<128x128xf32>, vector<128x128xf32> -> vector<128x128xf32>
      %c0_19 = arith.constant 0 : index
      %c0_20 = arith.constant 0 : index
      %25 = vector.load %arg8[%c0_19, %c0_20] : memref<128x128xf32, #tpu.memory_space<vmem>>, vector<128x128xf32>
      tpu.vector_store %arg8[%c0_19, %c0_20], %24 {strides = array<i32>} : memref<128x128xf32, #tpu.memory_space<vmem>>, vector<128x128xf32>,
    } else {
    }
    %c0_i32_2 = arith.constant 0 : i32
    %5 = arith.cmpi eq, %arg2, %c0_i32_2 : i32
    %6 = arith.extui %5 : i1 to i32
    %c0_i32_3 = arith.constant 0 : i32
    %7 = arith.cmpi ne, %6, %c0_i32_3 : i32
    scf.if %7 {
      %cst_13 = arith.constant 0.000000e+00 : f32
      %21 = vector.broadcast %cst_13 : f32 to vector<128x128xf32>
      %c0_14 = arith.constant 0 : index
      %c0_15 = arith.constant 0 : index
      %22 = vector.load %arg9[%c0_14, %c0_15] : memref<128x128xf32, #tpu.memory_space<vmem>>, vector<128x128xf32>
      tpu.vector_store %arg9[%c0_14, %c0_15], %21 {strides = array<i32>} : memref<128x128xf32, #tpu.memory_space<vmem>>, vector<128x128xf32>,
    } else {
    }
    %c128_i32 = arith.constant 128 : i32
    %8 = arith.muli %arg2, %c128_i32 : i32
    %9 = tpu.assume_multiple %8, 128 : i32
    %c0 = arith.constant 0 : index
    %c0_4 = arith.constant 0 : index
    %10 = vector.load %arg9[%c0, %c0_4] : memref<128x128xf32, #tpu.memory_space<vmem>>, vector<128x128xf32>
    %c0_5 = arith.constant 0 : index
    %c0_6 = arith.constant 0 : index
    %c0_7 = arith.constant 0 : index
    %11 = vector.load %arg5[%c0_5, %c0_6, %c0_7] : memref<1x128x128xf32, #tpu.memory_space<vmem>>, vector<1x128x128xf32>
    %12 = vector.shape_cast %11 : vector<1x128x128xf32> to vector<128x128xf32>
    %13 = arith.index_cast %9 : i32 to index
    %c0_8 = arith.constant 0 : index
    %14 = vector.load %arg8[%13, %c0_8] : memref<128x128xf32, #tpu.memory_space<vmem>>, vector<128x128xf32>
    %cst = arith.constant dense<0.000000e+00> : vector<128x128xf32>
    %15 = tpu.matmul %12, %14, %cst {dimension_numbers = #tpu.dot_dimension_numbers<[1], [0], [0], [1], [0, 0, 1, 1], [], []>} : vector<128x128xf32>, vector<128x128xf32>, vector<128x128xf32> -> vector<128x128xf32>
    %16 = arith.addf %10, %15 : vector<128x128xf32>
    %c0_9 = arith.constant 0 : index
    %c0_10 = arith.constant 0 : index
    %17 = vector.load %arg9[%c0_9, %c0_10] : memref<128x128xf32, #tpu.memory_space<vmem>>, vector<128x128xf32>
    tpu.vector_store %arg9[%c0_9, %c0_10], %16 {strides = array<i32>} : memref<128x128xf32, #tpu.memory_space<vmem>>, vector<128x128xf32>,
    %c0_i32_11 = arith.constant 0 : i32
    %18 = arith.cmpi eq, %arg2, %c0_i32_11 : i32
    %19 = arith.extui %18 : i1 to i32
    %c0_i32_12 = arith.constant 0 : i32
    %20 = arith.cmpi ne, %19, %c0_i32_12 : i32
    scf.if %20 {
      %c0_13 = arith.constant 0 : index
      %c0_14 = arith.constant 0 : index
      %21 = vector.load %arg9[%c0_13, %c0_14] : memref<128x128xf32, #tpu.memory_space<vmem>>, vector<128x128xf32>
      %c0_15 = arith.constant 0 : index
      %c0_16 = arith.constant 0 : index
      %22 = vector.load %arg6[%c0_15, %c0_16] : memref<1x128xf32, #tpu.memory_space<vmem>>, vector<1x128xf32>
      %23 = vector.broadcast %22 : vector<1x128xf32> to vector<128x128xf32>
      %24 = arith.addf %21, %23 : vector<128x128xf32>
      %c0_17 = arith.constant 0 : index
      %c0_18 = arith.constant 0 : index
      %c0_19 = arith.constant 0 : index
      %25 = vector.load %arg7[%c0_17, %c0_18, %c0_19] : memref<1x128x128xf32, #tpu.memory_space<vmem>>, vector<1x128x128xf32>
      %26 = vector.shape_cast %25 : vector<1x128x128xf32> to vector<128x128xf32>
      %27 = vector.shape_cast %24 : vector<128x128xf32> to vector<1x128x128xf32>
      tpu.vector_store %arg7[%c0_17, %c0_18, %c0_19], %27 {strides = array<i32>} : memref<1x128x128xf32, #tpu.memory_space<vmem>>, vector<1x128x128xf32>,
    } else {
    }
    return
  }
  func.func @transform_0(%arg0: i32, %arg1: i32, %arg2: i32) -> (i32, i32, i32) {
    %c0_i32 = arith.constant 0 : i32
    %c0_i32_0 = arith.constant 0 : i32
    %c0_i32_1 = arith.constant 0 : i32
    return %arg0, %c0_i32, %c0_i32_0 : i32, i32, i32
  }
  func.func @transform_1(%arg0: i32, %arg1: i32, %arg2: i32) -> (i32, i32) {
    %c0_i32 = arith.constant 0 : i32
    %c0_i32_0 = arith.constant 0 : i32
    %c0_i32_1 = arith.constant 0 : i32
    return %c0_i32, %c0_i32_0 : i32, i32
  }
  func.func @transform_2(%arg0: i32, %arg1: i32, %arg2: i32) -> (i32, i32, i32) {
    %c0_i32 = arith.constant 0 : i32
    return %arg0, %arg1, %arg2 : i32, i32, i32
  }
  func.func @transform_3(%arg0: i32, %arg1: i32, %arg2: i32) -> (i32, i32) {
    %c0_i32 = arith.constant 0 : i32
    %c0_i32_0 = arith.constant 0 : i32
    %c0_i32_1 = arith.constant 0 : i32
    return %c0_i32, %c0_i32_0 : i32, i32
  }
  func.func @transform_4(%arg0: i32, %arg1: i32, %arg2: i32) -> (i32, i32, i32) {
    %c0_i32 = arith.constant 0 : i32
    %c0_i32_0 = arith.constant 0 : i32
    return %arg0, %arg1, %c0_i32 : i32, i32, i32
  }
}

</mosaic_0001>

<llo_original>
// kernel: tpu_custom_call.1
$region0: #{tpu_custom_call.1}
  #allocation0 [shape = 'u32[]', space=smem, size = 0x4, offset = 0x4, fixed_abs, tag = 'smem constant byte address 0x4 - core index']
  #allocation1 [shape = 'u32[144,128]{1,0:T(1,128)}', space=vmem, size = 0x12000, scoped, tag = 'internal scratch']
  #allocation2 [shape = 'f32[128,128]{1,0:T(8,128)}', space=vmem, size = 0x10000, scoped, tag = 'scratch operand']
  #allocation3 [shape = 'f32[128,128]{1,0:T(8,128)}', space=vmem, size = 0x10000, scoped, tag = 'scratch operand']
  %s0 = inlined_call_operand.hbm [shape: f32[2,128,128], index: 0, kind: input, shape index: {}]
  %s1 = inlined_call_operand.hbm [shape: f32[128,128], index: 1, kind: input, shape index: {}]
  %s2 = inlined_call_operand.hbm [shape: f32[2,128,128], index: 2, kind: input, shape index: {}]
  %s3 = inlined_call_operand.vmem [shape: f32[1,128], index: 3, kind: input, shape index: {}]
  %s4 = inlined_call_operand.hbm [shape: f32[2,128,128], index: 4, kind: output, shape index: {}]
  %s5 = sld [smem:[#allocation0]]
  $region73: #{tpu_custom_call.1} parent=0
    _
  %s7 = ssub.s32 1, %s5
  %s8 = scalar_select 0, %s7, %s5
  $region1: #{tpu_custom_call.1} parent=0
    #allocation4 [shape = 'u8[131072]{0}', space=vmem, size = 0x20000, scoped, tag = 'input window, operand 0']
    #allocation5 [shape = 's32[2]{0}', space=sflag, size = 0x8, scoped, tag = 'scoped memory for tpu_custom_call.1']
    #allocation6 [shape = 's32[2]{0}', space=sflag, size = 0x8, scoped, tag = 'scoped memory for tpu_custom_call.1']
    #allocation7 [shape = 'u8[65536]{0}', space=vmem, size = 0x10000, scoped, tag = 'input window, operand 1, single buffered']
    #allocation8 [shape = 's32[1]{0}', space=sflag, size = 0x4, scoped, tag = 'scoped memory for tpu_custom_call.1']
    #allocation9 [shape = 'u8[131072]{0}', space=vmem, size = 0x20000, scoped, tag = 'input window, operand 2']
    #allocation10 [shape = 'u8[131072]{0}', space=vmem, size = 0x20000, scoped, tag = 'output window, operand 0']
    %9 = vsyncpa [#allocation5], 0
    %s10 = scalar_lea.sflag [#allocation5], 1
    %11 = vsyncpa %s10, 0
    %12 = vsyncpa [#allocation8], 0
    %13 = vsyncpa [#allocation6], 0
    %s14 = scalar_lea.sflag [#allocation6], 1
    %15 = vsyncpa %s14, 0
    loop: start=0, step=1, limit=4
    $region2: #{tpu_custom_call.1} parent=1 // loop_pre_header
      _
    $region3: #{tpu_custom_call.1} parent=1 // loop_header
      %s17 = sphi 0, %s21
      %p18 = scmp.ge.s32.totalorder %s17, 4
      %s24 = sphi 0, %s43
      %s25 = sphi 0, %s39
      %s26 = sphi 0, %s35
      %s27 = sphi 0, %s24
      %s28 = sphi 0, %s25
      %s29 = sphi 0, %s26
      %s30 = sphi 0, %s27
      %s31 = sphi 0, %s28
      %s32 = sphi 0, %s29
      %s46 = sphi 0, %s48
      %s49 = sphi 0, %s46
      %s50 = sphi 0, %s49
      %s66 = sphi 0, %s50
      %s70 = sphi 0, %s70
      %s72 = sphi 0, %s70
      %s73 = sphi 0, %s72
      %s87 = sphi 0, %s73
      %s97 = sphi 0, %s99
      %s100 = sphi 0, %s97
      %s101 = sphi 0, %s100
      %s117 = sphi 0, %s101
      %s121 = sphi 0, %s121
      %s123 = sphi 0, %s121
      %s124 = sphi 0, %s123
      %s138 = sphi 0, %s124
      %s146 = sphi 0, %s148
      %s149 = sphi 0, %s146
      %s150 = sphi 0, %s149
      %s166 = sphi 0, %s150
    $region4: #{tpu_custom_call.1} parent=1 // loop_header_branch
      %20 = sbr.rel (%p18) target = $region8
    $region5: #{tpu_custom_call.1} parent=1 // loop_body
      %s22 = ssub.s32 %s17, 1
      %s23 = ssub.s32 %s17, 2
      %s33 = sadd.s32 1, %s26
      %p34 = scmp.ge.s32.totalorder %s33, 1
      %s35 = scalar_select %p34, 0, %s33
      %s36 = sadd.s32 1, %s25
      %s37 = scalar_select %p34, %s36, %s25
      %p38 = scmp.ge.s32.totalorder %s37, 1
      %s39 = scalar_select %p38, 0, %s37
      %s40 = sadd.s32 1, %s24
      %s41 = scalar_select %p38, %s40, %s24
      %p42 = scmp.ge.s32.totalorder %s41, 2
      %s43 = scalar_select %p42, 0, %s41
      %s44 = ssub.s32 %s24, %s43
      %p45 = scmp.eq.s32.totalorder %s44, 0
      %s47 = sadd.s32 %s46, 1
      %s48 = scalar_select %p45, %s46, %s47
      %p51 = pneg %p45
      %p52 = scmp.eq.s32.totalorder %s17, 1
      %p53 = por %p51, %p52
      %p54 = scmp.ne.s32.totalorder %s46, %s49
      %p55 = scmp.eq.s32.totalorder %s17, 0
      %p56 = por %p54, %p55
      %p57 = scmp.ne.s32.totalorder %s46, %s49
      %p58 = scmp.eq.s32.totalorder %s22, 1
      %p59 = por %p57, %p58
      %p60 = scmp.ne.s32.totalorder %s49, %s50
      %p61 = scmp.eq.s32.totalorder %s22, 0
      %p62 = por %p60, %p61
      %p63 = scmp.ne.s32.totalorder %s49, %s50
      %p64 = scmp.eq.s32.totalorder %s23, 1
      %p65 = por %p63, %p64
      %p67 = scmp.ne.s32.totalorder %s50, %s66
      %p68 = scmp.eq.s32.totalorder %s23, 0
      %p69 = por %p67, %p68
      %s71 = sadd.s32 %s70, 1
      %p74 = scmp.eq.s32.totalorder %s17, 1
      %p75 = scmp.ne.s32.totalorder %s70, %s72
      %p76 = scmp.eq.s32.totalorder %s17, 0
      %p77 = por %p75, %p76
      %p78 = scmp.ne.s32.totalorder %s70, %s72
      %p79 = scmp.eq.s32.totalorder %s22, 1
      %p80 = por %p78, %p79
      %p81 = scmp.ne.s32.totalorder %s72, %s73
      %p82 = scmp.eq.s32.totalorder %s22, 0
      %p83 = por %p81, %p82
      %p84 = scmp.ne.s32.totalorder %s72, %s73
      %p85 = scmp.eq.s32.totalorder %s23, 1
      %p86 = por %p84, %p85
      %p88 = scmp.ne.s32.totalorder %s73, %s87
      %p89 = scmp.eq.s32.totalorder %s23, 0
      %p90 = por %p88, %p89
      %s91 = ssub.s32 %s24, %s43
      %s92 = ssub.s32 %s25, %s39
      %s93 = sor.u32 %s91, %s92
      %s94 = ssub.s32 %s26, %s35
      %s95 = sor.u32 %s93, %s94
      %p96 = scmp.eq.s32.totalorder %s95, 0
      %s98 = sadd.s32 %s97, 1
      %s99 = scalar_select %p96, %s97, %s98
      %p102 = pneg %p96
      %p103 = scmp.eq.s32.totalorder %s17, 1
      %p104 = por %p102, %p103
      %p105 = scmp.ne.s32.totalorder %s97, %s100
      %p106 = scmp.eq.s32.totalorder %s17, 0
      %p107 = por %p105, %p106
      %p108 = scmp.ne.s32.totalorder %s97, %s100
      %p109 = scmp.eq.s32.totalorder %s22, 1
      %p110 = por %p108, %p109
      %p111 = scmp.ne.s32.totalorder %s100, %s101
      %p112 = scmp.eq.s32.totalorder %s22, 0
      %p113 = por %p111, %p112
      %p114 = scmp.ne.s32.totalorder %s100, %s101
      %p115 = scmp.eq.s32.totalorder %s23, 1
      %p116 = por %p114, %p115
      %p118 = scmp.ne.s32.totalorder %s101, %s117
      %p119 = scmp.eq.s32.totalorder %s23, 0
      %p120 = por %p118, %p119
      %s122 = sadd.s32 %s121, 1
      %p125 = scmp.eq.s32.totalorder %s17, 1
      %p126 = scmp.ne.s32.totalorder %s121, %s123
      %p127 = scmp.eq.s32.totalorder %s17, 0
      %p128 = por %p126, %p127
      %p129 = scmp.ne.s32.totalorder %s121, %s123
      %p130 = scmp.eq.s32.totalorder %s22, 1
      %p131 = por %p129, %p130
      %p132 = scmp.ne.s32.totalorder %s123, %s124
      %p133 = scmp.eq.s32.totalorder %s22, 0
      %p134 = por %p132, %p133
      %p135 = scmp.ne.s32.totalorder %s123, %s124
      %p136 = scmp.eq.s32.totalorder %s23, 1
      %p137 = por %p135, %p136
      %p139 = scmp.ne.s32.totalorder %s124, %s138
      %p140 = scmp.eq.s32.totalorder %s23, 0
      %p141 = por %p139, %p140
      %s142 = ssub.s32 %s24, %s43
      %s143 = ssub.s32 %s25, %s39
      %s144 = sor.u32 %s142, %s143
      %p145 = scmp.eq.s32.totalorder %s144, 0
      %s147 = sadd.s32 %s146, 1
      %s148 = scalar_select %p145, %s146, %s147
      %p151 = pneg %p145
      %p152 = scmp.eq.s32.totalorder %s17, 1
      %p153 = por %p151, %p152
      %p154 = scmp.ne.s32.totalorder %s146, %s149
      %p155 = scmp.eq.s32.totalorder %s17, 0
      %p156 = por %p154, %p155
      %p157 = scmp.ne.s32.totalorder %s146, %s149
      %p158 = scmp.eq.s32.totalorder %s22, 1
      %p159 = por %p157, %p158
      %p160 = scmp.ne.s32.totalorder %s149, %s150
      %p161 = scmp.eq.s32.totalorder %s22, 0
      %p162 = por %p160, %p161
      %p163 = scmp.ne.s32.totalorder %s149, %s150
      %p164 = scmp.eq.s32.totalorder %s23, 1
      %p165 = por %p163, %p164
      %p167 = scmp.ne.s32.totalorder %s150, %s166
      %p168 = scmp.eq.s32.totalorder %s23, 0
      %p169 = por %p167, %p168
      %p170 = scmp.le.s32.totalorder 1, %s17
      %p171 = scmp.lt.s32.totalorder %s17, 3
      %p172 = pnand %p170, %p171
      %p173 = pneg %p172
      // Predicated region
      $region9: #{tpu_custom_call.1} parent=5 // pred_check
        _
      $region10: #{tpu_custom_call.1} parent=5 // pred_check_branch
        %175 = sbr.rel (%p172) target = $region12
      $region11: #{tpu_custom_call.1} parent=5 // pred_region
        %s176 = ssub.s32 %s17, 1
        // Predicated region
        $region13: #{tpu_custom_call.1} parent=11 // pred_check
          %p177 = pneg %p83
        $region14: #{tpu_custom_call.1} parent=11 // pred_check_branch
          %179 = sbr.rel (%p177) target = $region16
        $region15: #{tpu_custom_call.1} parent=11 // pred_region
          %s181 = ssub.s32 2048, 2048
          %182 = vsyncadd [#allocation8], %s181
          %s183 = sshll.u32 [#allocation7], 4
          %s184 = int_to_ptr.vmem [resolvable:$true] %s183
          %189 = dma.hbm_to_vmem [thread:$0]  %s1, 2048, %s184, [#allocation8], 128, 128, 8
        $region16: #{tpu_custom_call.1} parent=11 // pred_fallthru
          _
        // Predicated region
        $region17: #{tpu_custom_call.1} parent=11 // pred_check
          %p190 = pneg %p134
        $region18: #{tpu_custom_call.1} parent=11 // pred_check_branch
          %192 = sbr.rel (%p190) target = $region20
        $region19: #{tpu_custom_call.1} parent=11 // pred_region
          _
        $region20: #{tpu_custom_call.1} parent=11 // pred_fallthru
          _
      $region12: #{tpu_custom_call.1} parent=5 // pred_fallthru
        _
      %p193 = scmp.lt.s32.totalorder %s17, 2
      // Predicated region
      $region21: #{tpu_custom_call.1} parent=5 // pred_check
        %p194 = pneg %p193
      $region22: #{tpu_custom_call.1} parent=5 // pred_check_branch
        %196 = sbr.rel (%p194) target = $region24
      $region23: #{tpu_custom_call.1} parent=5 // pred_region
        // Predicated region
        $region25: #{tpu_custom_call.1} parent=23 // pred_check
          %p197 = pneg %p56
        $region26: #{tpu_custom_call.1} parent=23 // pred_check_branch
          %199 = sbr.rel (%p197) target = $region28
        $region27: #{tpu_custom_call.1} parent=23 // pred_region
          %s200 = sand.u32 %s17, 1
          %s201 = scalar_lea.sflag [#allocation5], %s200
          %s202 = sand.u32 %s46, 1
          %s203 = smul.addr %s202, 128
          %s204 = scalar_lea.vmem [#allocation4], %s203
          %s206 = ssub.s32 2048, 2048
          %207 = vsyncadd %s201, %s206
          %s208 = smul.addr %s24, 16
          %s209 = smul.addr %s208, 128
          %s210 = scalar_lea.hbm %s0, %s209
          %s211 = sshll.u32 %s204, 4
          %s212 = int_to_ptr.vmem [resolvable:$true] %s211
          %217 = dma.hbm_to_vmem [thread:$0]  %s210, 2048, %s212, %s201, 128, 128, 8
        $region28: #{tpu_custom_call.1} parent=23 // pred_fallthru
          _
        // Predicated region
        $region29: #{tpu_custom_call.1} parent=23 // pred_check
          %p218 = pneg %p107
        $region30: #{tpu_custom_call.1} parent=23 // pred_check_branch
          %220 = sbr.rel (%p218) target = $region32
        $region31: #{tpu_custom_call.1} parent=23 // pred_region
          %s221 = sand.u32 %s17, 1
          %s222 = scalar_lea.sflag [#allocation5], %s221
          %s223 = sand.u32 %s97, 1
          %s224 = smul.addr %s223, 128
          %s225 = scalar_lea.vmem [#allocation9], %s224
          %s226 = smul.u32 16, %s25
          %s228 = ssub.s32 2048, 2048
          %229 = vsyncadd %s222, %s228
          %s230 = sadd.s32 %s26, %s226
          %s231 = smul.addr %s24, 16
          %s232 = sadd.s32 %s230, %s231
          %s233 = smul.addr %s232, 128
          %s234 = scalar_lea.hbm %s2, %s233
          %s235 = sshll.u32 %s225, 4
          %s236 = int_to_ptr.vmem [resolvable:$true] %s235
          %241 = dma.hbm_to_vmem [thread:$0]  %s234, 2048, %s236, %s222, 128, 128, 8
        $region32: #{tpu_custom_call.1} parent=23 // pred_fallthru
          _
      $region24: #{tpu_custom_call.1} parent=5 // pred_fallthru
        _
      %p242 = scmp.le.s32.totalorder 1, %s17
      %p243 = scmp.lt.s32.totalorder %s17, 3
      %p244 = pnand %p242, %p243
      %p245 = pneg %p244
      // Predicated region
      $region33: #{tpu_custom_call.1} parent=5 // pred_check
        _
      $region34: #{tpu_custom_call.1} parent=5 // pred_check_branch
        %247 = sbr.rel (%p244) target = $region36
      $region35: #{tpu_custom_call.1} parent=5 // pred_region
        %s248 = ssub.s32 %s17, 1
        %s249 = sand.u32 %s22, 1
        %s250 = scalar_lea.sflag [#allocation5], %s249
        %s251 = sand.u32 %s49, 1
        %s252 = smul.addr %s251, 128
        %s253 = scalar_lea.vmem [#allocation4], %s252
        // Predicated region
        $region37: #{tpu_custom_call.1} parent=35 // pred_check
          %p254 = pneg %p62
        $region38: #{tpu_custom_call.1} parent=35 // pred_check_branch
          %256 = sbr.rel (%p254) target = $region40
        $region39: #{tpu_custom_call.1} parent=35 // pred_region
          %257 = dma.done %s250, 2048
        $region40: #{tpu_custom_call.1} parent=35 // pred_fallthru
          _
        // Predicated region
        $region41: #{tpu_custom_call.1} parent=35 // pred_check
          %p258 = pneg %p83
        $region42: #{tpu_custom_call.1} parent=35 // pred_check_branch
          %260 = sbr.rel (%p258) target = $region44
        $region43: #{tpu_custom_call.1} parent=35 // pred_region
          %261 = dma.done [#allocation8], 2048
        $region44: #{tpu_custom_call.1} parent=35 // pred_fallthru
          _
        %s262 = sand.u32 %s22, 1
        %s263 = scalar_lea.sflag [#allocation5], %s262
        %s264 = sand.u32 %s100, 1
        %s265 = smul.addr %s264, 128
        %s266 = scalar_lea.vmem [#allocation9], %s265
        // Predicated region
        $region45: #{tpu_custom_call.1} parent=35 // pred_check
          %p267 = pneg %p113
        $region46: #{tpu_custom_call.1} parent=35 // pred_check_branch
          %269 = sbr.rel (%p267) target = $region48
        $region47: #{tpu_custom_call.1} parent=35 // pred_region
          %270 = dma.done %s263, 2048
        $region48: #{tpu_custom_call.1} parent=35 // pred_fallthru
          _
        %s271 = sand.u32 %s22, 1
        %s272 = scalar_lea.sflag [#allocation5], %s271
        %s273 = sand.u32 %s49, 1
        %s274 = smul.addr %s273, 128
        %s275 = scalar_lea.vmem [#allocation4], %s274
        %p276 = pneg %p62
        %p277 = pneg %p59
        %p278 = pneg %p83
        %p279 = pneg %p80
        %s280 = sand.u32 %s22, 1
        %s281 = scalar_lea.sflag [#allocation5], %s280
        %s282 = sand.u32 %s100, 1
        %s283 = smul.addr %s282, 128
        %s284 = scalar_lea.vmem [#allocation9], %s283
        %p285 = pneg %p113
        %p286 = pneg %p110
        %p287 = pneg %p134
        %p288 = pneg %p131
        %p289 = pneg %p162
        %p290 = pneg %p159
        %s291 = sand.u32 %s149, 1
        %s292 = scalar_lea.sflag [#allocation6], %s291
        %s293 = sand.u32 %s149, 1
        %s294 = smul.addr %s293, 128
        %s295 = scalar_lea.vmem [#allocation10], %s294
        %s296 = smul.u32 16, %s28
        %s297 = smul.u32 16, %s28
        %p298 = scmp.eq.s32.totalorder %s28, 0
        %p299 = scmp.eq.s32.totalorder %s29, 0
        %p300 = pnand %p298, %p299
        %p301 = pneg %p300
        // Predicated region
        $region49: #{tpu_custom_call.1} parent=35 // pred_check
          _
        $region50: #{tpu_custom_call.1} parent=35 // pred_check_branch
          %303 = sbr.rel (%p300) target = $region52
        $region51: #{tpu_custom_call.1} parent=35 // pred_region
          %v304 = vld [vmem:[%s253] sm:$0xff]
          %v305 = vld [vmem:[%s253 + $0x8] sm:$0xff]
          %v306 = vld [vmem:[%s253 + $0x10] sm:$0xff]
          %v307 = vld [vmem:[%s253 + $0x18] sm:$0xff]
          %v308 = vld [vmem:[%s253 + $0x20] sm:$0xff]
          %v309 = vld [vmem:[%s253 + $0x28] sm:$0xff]
          %v310 = vld [vmem:[%s253 + $0x30] sm:$0xff]
          %v311 = vld [vmem:[%s253 + $0x38] sm:$0xff]
          %v312 = vld [vmem:[%s253 + $0x40] sm:$0xff]
          %v313 = vld [vmem:[%s253 + $0x48] sm:$0xff]
          %v314 = vld [vmem:[%s253 + $0x50] sm:$0xff]
          %v315 = vld [vmem:[%s253 + $0x58] sm:$0xff]
          %v316 = vld [vmem:[%s253 + $0x60] sm:$0xff]
          %v317 = vld [vmem:[%s253 + $0x68] sm:$0xff]
          %v318 = vld [vmem:[%s253 + $0x70] sm:$0xff]
          %v319 = vld [vmem:[%s253 + $0x78] sm:$0xff]
          %v320 = vld [vmem:[#allocation7] sm:$0xff]
          %v321 = vld [vmem:[#allocation7 + $0x8] sm:$0xff]
          %v322 = vld [vmem:[#allocation7 + $0x10] sm:$0xff]
          %v323 = vld [vmem:[#allocation7 + $0x18] sm:$0xff]
          %v324 = vld [vmem:[#allocation7 + $0x20] sm:$0xff]
          %v325 = vld [vmem:[#allocation7 + $0x28] sm:$0xff]
          %v326 = vld [vmem:[#allocation7 + $0x30] sm:$0xff]
          %v327 = vld [vmem:[#allocation7 + $0x38] sm:$0xff]
          %v328 = vld [vmem:[#allocation7 + $0x40] sm:$0xff]
          %v329 = vld [vmem:[#allocation7 + $0x48] sm:$0xff]
          %v330 = vld [vmem:[#allocation7 + $0x50] sm:$0xff]
          %v331 = vld [vmem:[#allocation7 + $0x58] sm:$0xff]
          %v332 = vld [vmem:[#allocation7 + $0x60] sm:$0xff]
          %v333 = vld [vmem:[#allocation7 + $0x68] sm:$0xff]
          %v334 = vld [vmem:[#allocation7 + $0x70] sm:$0xff]
          %v335 = vld [vmem:[#allocation7 + $0x78] sm:$0xff]
          %336 = vmatprep.subr.mxu0 0.0
          %337 = vmatpush1.msra.mxu0 %v335
          %338 = vmatprep.subr.mxu0 0.0
          %339 = vmatpush1.msra.mxu0 %v334
          %340 = vmatprep.subr.mxu0 0.0
          %341 = vmatpush1.msra.mxu0 %v333
          %342 = vmatprep.subr.mxu0 0.0
          %343 = vmatpush1.msra.mxu0 %v332
          %344 = vmatprep.subr.mxu0 0.0
          %345 = vmatpush1.msra.mxu0 %v331
          %346 = vmatprep.subr.mxu0 0.0
          %347 = vmatpush1.msra.mxu0 %v330
          %348 = vmatprep.subr.mxu0 0.0
          %349 = vmatpush1.msra.mxu0 %v329
          %350 = vmatprep.subr.mxu0 0.0
          %351 = vmatpush1.msra.mxu0 %v328
          %352 = vmatprep.subr.mxu0 0.0
          %353 = vmatpush1.msra.mxu0 %v327
          %354 = vmatprep.subr.mxu0 0.0
          %355 = vmatpush1.msra.mxu0 %v326
          %356 = vmatprep.subr.mxu0 0.0
          %357 = vmatpush1.msra.mxu0 %v325
          %358 = vmatprep.subr.mxu0 0.0
          %359 = vmatpush1.msra.mxu0 %v324
          %360 = vmatprep.subr.mxu0 0.0
          %361 = vmatpush1.msra.mxu0 %v323
          %362 = vmatprep.subr.mxu0 0.0
          %363 = vmatpush1.msra.mxu0 %v322
          %364 = vmatprep.subr.mxu0 0.0
          %365 = vmatpush1.msra.mxu0 %v321
          %366 = vmatprep.subr.mxu0 0.0
          %367 = vmatpush1.msra.mxu0 %v320
          %368 = vmatprep.subr.mxu0 0.0
          %369 = vmatpush2.msra.mxu0 0.0
          %370 = vmatprep.subr.mxu0 0.0
          %371 = vmatpush2.msra.mxu0 0.0
          %372 = vmatprep.subr.mxu0 0.0
          %373 = vmatpush2.msra.mxu0 0.0
          %374 = vmatprep.subr.mxu0 0.0
          %375 = vmatpush2.msra.mxu0 0.0
          %376 = vmatprep.subr.mxu0 0.0
          %377 = vmatpush2.msra.mxu0 0.0
          %378 = vmatprep.subr.mxu0 0.0
          %379 = vmatpush2.msra.mxu0 0.0
          %380 = vmatprep.subr.mxu0 0.0
          %381 = vmatpush2.msra.mxu0 0.0
          %382 = vmatprep.subr.mxu0 0.0
          %383 = vmatpush2.msra.mxu0 0.0
          %384 = vmatprep.subr.mxu0 0.0
          %385 = vmatpush2.msra.mxu0 0.0
          %386 = vmatprep.subr.mxu0 0.0
          %387 = vmatpush2.msra.mxu0 0.0
          %388 = vmatprep.subr.mxu0 0.0
          %389 = vmatpush2.msra.mxu0 0.0
          %390 = vmatprep.subr.mxu0 0.0
          %391 = vmatpush2.msra.mxu0 0.0
          %392 = vmatprep.subr.mxu0 0.0
          %393 = vmatpush2.msra.mxu0 0.0
          %394 = vmatprep.subr.mxu0 0.0
          %395 = vmatpush2.msra.mxu0 0.0
          %396 = vmatprep.subr.mxu0 0.0
          %397 = vmatpush2.msra.mxu0 0.0
          %398 = vmatprep.subr.mxu0 0.0
          %399 = vmatpush2.msra.mxu0 0.0
          %400 = vmatprep.mubr.f32.mxu0 0.0
          %401 = vmatmul.mubr.f32.gmra.mxu0 %v304
          %v402 = vpop.f32.mrf.mxu0
          %v403 = vadd.f32 0.0, %v402
          %v404 = vpop.f32.mrf.mxu0
          %405 = vmatprep.mubr.f32.mxu0 0.0
          %406 = vmatmul.mubr.f32.gmra.mxu0 %v305
          %v407 = vpop.f32.mrf.mxu0
          %v408 = vadd.f32 0.0, %v407
          %v409 = vpop.f32.mrf.mxu0
          %410 = vmatprep.mubr.f32.mxu0 0.0
          %411 = vmatmul.mubr.f32.gmra.mxu0 %v306
          %v412 = vpop.f32.mrf.mxu0
          %v413 = vadd.f32 0.0, %v412
          %v414 = vpop.f32.mrf.mxu0
          %415 = vmatprep.mubr.f32.mxu0 0.0
          %416 = vmatmul.mubr.f32.gmra.mxu0 %v307
          %v417 = vpop.f32.mrf.mxu0
          %v418 = vadd.f32 0.0, %v417
          %v419 = vpop.f32.mrf.mxu0
          %420 = vmatprep.mubr.f32.mxu0 0.0
          %421 = vmatmul.mubr.f32.gmra.mxu0 %v308
          %v422 = vpop.f32.mrf.mxu0
          %v423 = vadd.f32 0.0, %v422
          %v424 = vpop.f32.mrf.mxu0
          %425 = vmatprep.mubr.f32.mxu0 0.0
          %426 = vmatmul.mubr.f32.gmra.mxu0 %v309
          %v427 = vpop.f32.mrf.mxu0
          %v428 = vadd.f32 0.0, %v427
          %v429 = vpop.f32.mrf.mxu0
          %430 = vmatprep.mubr.f32.mxu0 0.0
          %431 = vmatmul.mubr.f32.gmra.mxu0 %v310
          %v432 = vpop.f32.mrf.mxu0
          %v433 = vadd.f32 0.0, %v432
          %v434 = vpop.f32.mrf.mxu0
          %435 = vmatprep.mubr.f32.mxu0 0.0
          %436 = vmatmul.mubr.f32.gmra.mxu0 %v311
          %v437 = vpop.f32.mrf.mxu0
          %v438 = vadd.f32 0.0, %v437
          %v439 = vpop.f32.mrf.mxu0
          %440 = vmatprep.mubr.f32.mxu0 0.0
          %441 = vmatmul.mubr.f32.gmra.mxu0 %v312
          %v442 = vpop.f32.mrf.mxu0
          %v443 = vadd.f32 0.0, %v442
          %v444 = vpop.f32.mrf.mxu0
          %445 = vmatprep.mubr.f32.mxu0 0.0
          %446 = vmatmul.mubr.f32.gmra.mxu0 %v313
          %v447 = vpop.f32.mrf.mxu0
          %v448 = vadd.f32 0.0, %v447
          %v449 = vpop.f32.mrf.mxu0
          %450 = vmatprep.mubr.f32.mxu0 0.0
          %451 = vmatmul.mubr.f32.gmra.mxu0 %v314
          %v452 = vpop.f32.mrf.mxu0
          %v453 = vadd.f32 0.0, %v452
          %v454 = vpop.f32.mrf.mxu0
          %455 = vmatprep.mubr.f32.mxu0 0.0
          %456 = vmatmul.mubr.f32.gmra.mxu0 %v315
          %v457 = vpop.f32.mrf.mxu0
          %v458 = vadd.f32 0.0, %v457
          %v459 = vpop.f32.mrf.mxu0
          %460 = vmatprep.mubr.f32.mxu0 0.0
          %461 = vmatmul.mubr.f32.gmra.mxu0 %v316
          %v462 = vpop.f32.mrf.mxu0
          %v463 = vadd.f32 0.0, %v462
          %v464 = vpop.f32.mrf.mxu0
          %465 = vmatprep.mubr.f32.mxu0 0.0
          %466 = vmatmul.mubr.f32.gmra.mxu0 %v317
          %v467 = vpop.f32.mrf.mxu0
          %v468 = vadd.f32 0.0, %v467
          %v469 = vpop.f32.mrf.mxu0
          %470 = vmatprep.mubr.f32.mxu0 0.0
          %471 = vmatmul.mubr.f32.gmra.mxu0 %v318
          %v472 = vpop.f32.mrf.mxu0
          %v473 = vadd.f32 0.0, %v472
          %v474 = vpop.f32.mrf.mxu0
          %475 = vmatprep.mubr.f32.mxu0 0.0
          %476 = vmatmul.mubr.f32.gmra.mxu0 %v319
          %v477 = vpop.f32.mrf.mxu0
          %v478 = vadd.f32 0.0, %v477
          %v479 = vpop.f32.mrf.mxu0
          %480 = vdwg.mxu0
          %481 = vst [vmem:[#allocation2] sm:$0xff] %v403
          %482 = vst [vmem:[#allocation2 + $0x8] sm:$0xff] %v408
          %483 = vst [vmem:[#allocation2 + $0x10] sm:$0xff] %v413
          %484 = vst [vmem:[#allocation2 + $0x18] sm:$0xff] %v418
          %485 = vst [vmem:[#allocation2 + $0x20] sm:$0xff] %v423
          %486 = vst [vmem:[#allocation2 + $0x28] sm:$0xff] %v428
          %487 = vst [vmem:[#allocation2 + $0x30] sm:$0xff] %v433
          %488 = vst [vmem:[#allocation2 + $0x38] sm:$0xff] %v438
          %489 = vst [vmem:[#allocation2 + $0x40] sm:$0xff] %v443
          %490 = vst [vmem:[#allocation2 + $0x48] sm:$0xff] %v448
          %491 = vst [vmem:[#allocation2 + $0x50] sm:$0xff] %v453
          %492 = vst [vmem:[#allocation2 + $0x58] sm:$0xff] %v458
          %493 = vst [vmem:[#allocation2 + $0x60] sm:$0xff] %v463
          %494 = vst [vmem:[#allocation2 + $0x68] sm:$0xff] %v468
          %495 = vst [vmem:[#allocation2 + $0x70] sm:$0xff] %v473
          %496 = vst [vmem:[#allocation2 + $0x78] sm:$0xff] %v478
        $region52: #{tpu_custom_call.1} parent=35 // pred_fallthru
          _
        // Predicated region
        $region53: #{tpu_custom_call.1} parent=35 // pred_check
          %p497 = pneg %p299
        $region54: #{tpu_custom_call.1} parent=35 // pred_check_branch
          %499 = sbr.rel (%p497) target = $region56
        $region55: #{tpu_custom_call.1} parent=35 // pred_region
          %500 = vst [vmem:[#allocation3] sm:$0xff] 0.0
          %501 = vst [vmem:[#allocation3 + $0x8] sm:$0xff] 0.0
          %502 = vst [vmem:[#allocation3 + $0x10] sm:$0xff] 0.0
          %503 = vst [vmem:[#allocation3 + $0x18] sm:$0xff] 0.0
          %504 = vst [vmem:[#allocation3 + $0x20] sm:$0xff] 0.0
          %505 = vst [vmem:[#allocation3 + $0x28] sm:$0xff] 0.0
          %506 = vst [vmem:[#allocation3 + $0x30] sm:$0xff] 0.0
          %507 = vst [vmem:[#allocation3 + $0x38] sm:$0xff] 0.0
          %508 = vst [vmem:[#allocation3 + $0x40] sm:$0xff] 0.0
          %509 = vst [vmem:[#allocation3 + $0x48] sm:$0xff] 0.0
          %510 = vst [vmem:[#allocation3 + $0x50] sm:$0xff] 0.0
          %511 = vst [vmem:[#allocation3 + $0x58] sm:$0xff] 0.0
          %512 = vst [vmem:[#allocation3 + $0x60] sm:$0xff] 0.0
          %513 = vst [vmem:[#allocation3 + $0x68] sm:$0xff] 0.0
          %514 = vst [vmem:[#allocation3 + $0x70] sm:$0xff] 0.0
          %515 = vst [vmem:[#allocation3 + $0x78] sm:$0xff] 0.0
        $region56: #{tpu_custom_call.1} parent=35 // pred_fallthru
          _
        %s516 = smul.u32 %s29, 128
        %v517 = vld [vmem:[#allocation3] sm:$0xff]
        %v518 = vld [vmem:[#allocation3 + $0x8] sm:$0xff]
        %v519 = vld [vmem:[#allocation3 + $0x10] sm:$0xff]
        %v520 = vld [vmem:[#allocation3 + $0x18] sm:$0xff]
        %v521 = vld [vmem:[#allocation3 + $0x20] sm:$0xff]
        %v522 = vld [vmem:[#allocation3 + $0x28] sm:$0xff]
        %v523 = vld [vmem:[#allocation3 + $0x30] sm:$0xff]
        %v524 = vld [vmem:[#allocation3 + $0x38] sm:$0xff]
        %v525 = vld [vmem:[#allocation3 + $0x40] sm:$0xff]
        %v526 = vld [vmem:[#allocation3 + $0x48] sm:$0xff]
        %v527 = vld [vmem:[#allocation3 + $0x50] sm:$0xff]
        %v528 = vld [vmem:[#allocation3 + $0x58] sm:$0xff]
        %v529 = vld [vmem:[#allocation3 + $0x60] sm:$0xff]
        %v530 = vld [vmem:[#allocation3 + $0x68] sm:$0xff]
        %v531 = vld [vmem:[#allocation3 + $0x70] sm:$0xff]
        %v532 = vld [vmem:[#allocation3 + $0x78] sm:$0xff]
        %v533 = vld [vmem:[%s266] sm:$0xff]
        %v534 = vld [vmem:[%s266 + $0x8] sm:$0xff]
        %v535 = vld [vmem:[%s266 + $0x10] sm:$0xff]
        %v536 = vld [vmem:[%s266 + $0x18] sm:$0xff]
        %v537 = vld [vmem:[%s266 + $0x20] sm:$0xff]
        %v538 = vld [vmem:[%s266 + $0x28] sm:$0xff]
        %v539 = vld [vmem:[%s266 + $0x30] sm:$0xff]
        %v540 = vld [vmem:[%s266 + $0x38] sm:$0xff]
        %v541 = vld [vmem:[%s266 + $0x40] sm:$0xff]
        %v542 = vld [vmem:[%s266 + $0x48] sm:$0xff]
        %v543 = vld [vmem:[%s266 + $0x50] sm:$0xff]
        %v544 = vld [vmem:[%s266 + $0x58] sm:$0xff]
        %v545 = vld [vmem:[%s266 + $0x60] sm:$0xff]
        %v546 = vld [vmem:[%s266 + $0x68] sm:$0xff]
        %v547 = vld [vmem:[%s266 + $0x70] sm:$0xff]
        %v548 = vld [vmem:[%s266 + $0x78] sm:$0xff]
        %s549 = scalar_lea.vmem [#allocation2], %s516
        %v550 = vld [vmem:[%s549] sm:$0xff]
        %v551 = vld [vmem:[%s549 + $0x8] sm:$0xff]
        %v552 = vld [vmem:[%s549 + $0x10] sm:$0xff]
        %v553 = vld [vmem:[%s549 + $0x18] sm:$0xff]
        %v554 = vld [vmem:[%s549 + $0x20] sm:$0xff]
        %v555 = vld [vmem:[%s549 + $0x28] sm:$0xff]
        %v556 = vld [vmem:[%s549 + $0x30] sm:$0xff]
        %v557 = vld [vmem:[%s549 + $0x38] sm:$0xff]
        %v558 = vld [vmem:[%s549 + $0x40] sm:$0xff]
        %v559 = vld [vmem:[%s549 + $0x48] sm:$0xff]
        %v560 = vld [vmem:[%s549 + $0x50] sm:$0xff]
        %v561 = vld [vmem:[%s549 + $0x58] sm:$0xff]
        %v562 = vld [vmem:[%s549 + $0x60] sm:$0xff]
        %v563 = vld [vmem:[%s549 + $0x68] sm:$0xff]
        %v564 = vld [vmem:[%s549 + $0x70] sm:$0xff]
        %v565 = vld [vmem:[%s549 + $0x78] sm:$0xff]
        %566 = vmatprep.subr.mxu0 0.0
        %567 = vmatpush1.msra.mxu0 %v565
        %568 = vmatprep.subr.mxu0 0.0
        %569 = vmatpush1.msra.mxu0 %v564
        %570 = vmatprep.subr.mxu0 0.0
        %571 = vmatpush1.msra.mxu0 %v563
        %572 = vmatprep.subr.mxu0 0.0
        %573 = vmatpush1.msra.mxu0 %v562
        %574 = vmatprep.subr.mxu0 0.0
        %575 = vmatpush1.msra.mxu0 %v561
        %576 = vmatprep.subr.mxu0 0.0
        %577 = vmatpush1.msra.mxu0 %v560
        %578 = vmatprep.subr.mxu0 0.0
        %579 = vmatpush1.msra.mxu0 %v559
        %580 = vmatprep.subr.mxu0 0.0
        %581 = vmatpush1.msra.mxu0 %v558
        %582 = vmatprep.subr.mxu0 0.0
        %583 = vmatpush1.msra.mxu0 %v557
        %584 = vmatprep.subr.mxu0 0.0
        %585 = vmatpush1.msra.mxu0 %v556
        %586 = vmatprep.subr.mxu0 0.0
        %587 = vmatpush1.msra.mxu0 %v555
        %588 = vmatprep.subr.mxu0 0.0
        %589 = vmatpush1.msra.mxu0 %v554
        %590 = vmatprep.subr.mxu0 0.0
        %591 = vmatpush1.msra.mxu0 %v553
        %592 = vmatprep.subr.mxu0 0.0
        %593 = vmatpush1.msra.mxu0 %v552
        %594 = vmatprep.subr.mxu0 0.0
        %595 = vmatpush1.msra.mxu0 %v551
        %596 = vmatprep.subr.mxu0 0.0
        %597 = vmatpush1.msra.mxu0 %v550
        %598 = vmatprep.subr.mxu0 0.0
        %599 = vmatpush2.msra.mxu0 0.0
        %600 = vmatprep.subr.mxu0 0.0
        %601 = vmatpush2.msra.mxu0 0.0
        %602 = vmatprep.subr.mxu0 0.0
        %603 = vmatpush2.msra.mxu0 0.0
        %604 = vmatprep.subr.mxu0 0.0
        %605 = vmatpush2.msra.mxu0 0.0
        %606 = vmatprep.subr.mxu0 0.0
        %607 = vmatpush2.msra.mxu0 0.0
        %608 = vmatprep.subr.mxu0 0.0
        %609 = vmatpush2.msra.mxu0 0.0
        %610 = vmatprep.subr.mxu0 0.0
        %611 = vmatpush2.msra.mxu0 0.0
        %612 = vmatprep.subr.mxu0 0.0
        %613 = vmatpush2.msra.mxu0 0.0
        %614 = vmatprep.subr.mxu0 0.0
        %615 = vmatpush2.msra.mxu0 0.0
        %616 = vmatprep.subr.mxu0 0.0
        %617 = vmatpush2.msra.mxu0 0.0
        %618 = vmatprep.subr.mxu0 0.0
        %619 = vmatpush2.msra.mxu0 0.0
        %620 = vmatprep.subr.mxu0 0.0
        %621 = vmatpush2.msra.mxu0 0.0
        %622 = vmatprep.subr.mxu0 0.0
        %623 = vmatpush2.msra.mxu0 0.0
        %624 = vmatprep.subr.mxu0 0.0
        %625 = vmatpush2.msra.mxu0 0.0
        %626 = vmatprep.subr.mxu0 0.0
        %627 = vmatpush2.msra.mxu0 0.0
        %628 = vmatprep.subr.mxu0 0.0
        %629 = vmatpush2.msra.mxu0 0.0
        %630 = vmatprep.mubr.f32.mxu0 0.0
        %631 = vmatmul.mubr.f32.gmra.mxu0 %v533
        %v632 = vpop.f32.mrf.mxu0
        %v633 = vadd.f32 0.0, %v632
        %v634 = vpop.f32.mrf.mxu0
        %635 = vmatprep.mubr.f32.mxu0 0.0
        %636 = vmatmul.mubr.f32.gmra.mxu0 %v534
        %v637 = vpop.f32.mrf.mxu0
        %v638 = vadd.f32 0.0, %v637
        %v639 = vpop.f32.mrf.mxu0
        %640 = vmatprep.mubr.f32.mxu0 0.0
        %641 = vmatmul.mubr.f32.gmra.mxu0 %v535
        %v642 = vpop.f32.mrf.mxu0
        %v643 = vadd.f32 0.0, %v642
        %v644 = vpop.f32.mrf.mxu0
        %645 = vmatprep.mubr.f32.mxu0 0.0
        %646 = vmatmul.mubr.f32.gmra.mxu0 %v536
        %v647 = vpop.f32.mrf.mxu0
        %v648 = vadd.f32 0.0, %v647
        %v649 = vpop.f32.mrf.mxu0
        %650 = vmatprep.mubr.f32.mxu0 0.0
        %651 = vmatmul.mubr.f32.gmra.mxu0 %v537
        %v652 = vpop.f32.mrf.mxu0
        %v653 = vadd.f32 0.0, %v652
        %v654 = vpop.f32.mrf.mxu0
        %655 = vmatprep.mubr.f32.mxu0 0.0
        %656 = vmatmul.mubr.f32.gmra.mxu0 %v538
        %v657 = vpop.f32.mrf.mxu0
        %v658 = vadd.f32 0.0, %v657
        %v659 = vpop.f32.mrf.mxu0
        %660 = vmatprep.mubr.f32.mxu0 0.0
        %661 = vmatmul.mubr.f32.gmra.mxu0 %v539
        %v662 = vpop.f32.mrf.mxu0
        %v663 = vadd.f32 0.0, %v662
        %v664 = vpop.f32.mrf.mxu0
        %665 = vmatprep.mubr.f32.mxu0 0.0
        %666 = vmatmul.mubr.f32.gmra.mxu0 %v540
        %v667 = vpop.f32.mrf.mxu0
        %v668 = vadd.f32 0.0, %v667
        %v669 = vpop.f32.mrf.mxu0
        %670 = vmatprep.mubr.f32.mxu0 0.0
        %671 = vmatmul.mubr.f32.gmra.mxu0 %v541
        %v672 = vpop.f32.mrf.mxu0
        %v673 = vadd.f32 0.0, %v672
        %v674 = vpop.f32.mrf.mxu0
        %675 = vmatprep.mubr.f32.mxu0 0.0
        %676 = vmatmul.mubr.f32.gmra.mxu0 %v542
        %v677 = vpop.f32.mrf.mxu0
        %v678 = vadd.f32 0.0, %v677
        %v679 = vpop.f32.mrf.mxu0
        %680 = vmatprep.mubr.f32.mxu0 0.0
        %681 = vmatmul.mubr.f32.gmra.mxu0 %v543
        %v682 = vpop.f32.mrf.mxu0
        %v683 = vadd.f32 0.0, %v682
        %v684 = vpop.f32.mrf.mxu0
        %685 = vmatprep.mubr.f32.mxu0 0.0
        %686 = vmatmul.mubr.f32.gmra.mxu0 %v544
        %v687 = vpop.f32.mrf.mxu0
        %v688 = vadd.f32 0.0, %v687
        %v689 = vpop.f32.mrf.mxu0
        %690 = vmatprep.mubr.f32.mxu0 0.0
        %691 = vmatmul.mubr.f32.gmra.mxu0 %v545
        %v692 = vpop.f32.mrf.mxu0
        %v693 = vadd.f32 0.0, %v692
        %v694 = vpop.f32.mrf.mxu0
        %695 = vmatprep.mubr.f32.mxu0 0.0
        %696 = vmatmul.mubr.f32.gmra.mxu0 %v546
        %v697 = vpop.f32.mrf.mxu0
        %v698 = vadd.f32 0.0, %v697
        %v699 = vpop.f32.mrf.mxu0
        %700 = vmatprep.mubr.f32.mxu0 0.0
        %701 = vmatmul.mubr.f32.gmra.mxu0 %v547
        %v702 = vpop.f32.mrf.mxu0
        %v703 = vadd.f32 0.0, %v702
        %v704 = vpop.f32.mrf.mxu0
        %705 = vmatprep.mubr.f32.mxu0 0.0
        %706 = vmatmul.mubr.f32.gmra.mxu0 %v548
        %v707 = vpop.f32.mrf.mxu0
        %v708 = vadd.f32 0.0, %v707
        %v709 = vpop.f32.mrf.mxu0
        %710 = vdwg.mxu0
        %v711 = vadd.f32 %v517, %v633
        %v712 = vadd.f32 %v518, %v638
        %v713 = vadd.f32 %v519, %v643
        %v714 = vadd.f32 %v520, %v648
        %v715 = vadd.f32 %v521, %v653
        %v716 = vadd.f32 %v522, %v658
        %v717 = vadd.f32 %v523, %v663
        %v718 = vadd.f32 %v524, %v668
        %v719 = vadd.f32 %v525, %v673
        %v720 = vadd.f32 %v526, %v678
        %v721 = vadd.f32 %v527, %v683
        %v722 = vadd.f32 %v528, %v688
        %v723 = vadd.f32 %v529, %v693
        %v724 = vadd.f32 %v530, %v698
        %v725 = vadd.f32 %v531, %v703
        %v726 = vadd.f32 %v532, %v708
        %727 = vst [vmem:[#allocation3] sm:$0xff] %v711
        %728 = vst [vmem:[#allocation3 + $0x8] sm:$0xff] %v712
        %729 = vst [vmem:[#allocation3 + $0x10] sm:$0xff] %v713
        %730 = vst [vmem:[#allocation3 + $0x18] sm:$0xff] %v714
        %731 = vst [vmem:[#allocation3 + $0x20] sm:$0xff] %v715
        %732 = vst [vmem:[#allocation3 + $0x28] sm:$0xff] %v716
        %733 = vst [vmem:[#allocation3 + $0x30] sm:$0xff] %v717
        %734 = vst [vmem:[#allocation3 + $0x38] sm:$0xff] %v718
        %735 = vst [vmem:[#allocation3 + $0x40] sm:$0xff] %v719
        %736 = vst [vmem:[#allocation3 + $0x48] sm:$0xff] %v720
        %737 = vst [vmem:[#allocation3 + $0x50] sm:$0xff] %v721
        %738 = vst [vmem:[#allocation3 + $0x58] sm:$0xff] %v722
        %739 = vst [vmem:[#allocation3 + $0x60] sm:$0xff] %v723
        %740 = vst [vmem:[#allocation3 + $0x68] sm:$0xff] %v724
        %741 = vst [vmem:[#allocation3 + $0x70] sm:$0xff] %v725
        %742 = vst [vmem:[#allocation3 + $0x78] sm:$0xff] %v726
        // Predicated region
        $region57: #{tpu_custom_call.1} parent=35 // pred_check
          %p743 = pneg %p299
        $region58: #{tpu_custom_call.1} parent=35 // pred_check_branch
          %745 = sbr.rel (%p743) target = $region60
        $region59: #{tpu_custom_call.1} parent=35 // pred_region
          %v746 = vld [vmem:[#allocation3] sm:$0xff]
          %v747 = vld [vmem:[#allocation3 + $0x8] sm:$0xff]
          %v748 = vld [vmem:[#allocation3 + $0x10] sm:$0xff]
          %v749 = vld [vmem:[#allocation3 + $0x18] sm:$0xff]
          %v750 = vld [vmem:[#allocation3 + $0x20] sm:$0xff]
          %v751 = vld [vmem:[#allocation3 + $0x28] sm:$0xff]
          %v752 = vld [vmem:[#allocation3 + $0x30] sm:$0xff]
          %v753 = vld [vmem:[#allocation3 + $0x38] sm:$0xff]
          %v754 = vld [vmem:[#allocation3 + $0x40] sm:$0xff]
          %v755 = vld [vmem:[#allocation3 + $0x48] sm:$0xff]
          %v756 = vld [vmem:[#allocation3 + $0x50] sm:$0xff]
          %v757 = vld [vmem:[#allocation3 + $0x58] sm:$0xff]
          %v758 = vld [vmem:[#allocation3 + $0x60] sm:$0xff]
          %v759 = vld [vmem:[#allocation3 + $0x68] sm:$0xff]
          %v760 = vld [vmem:[#allocation3 + $0x70] sm:$0xff]
          %v761 = vld [vmem:[#allocation3 + $0x78] sm:$0xff]
          %v762 = vld [vmem:[%s3] sm:$0x1]
          %v764 = vlaneseq
          %v765 = vshrl.u32 %v764, 7
          %v766 = vsub.s32 0, %v765
          %v767 = vrot.slane %v762, %v766
          %v769 = vadd.f32 %v746, %v767
          %v770 = vadd.f32 %v747, %v767
          %v771 = vadd.f32 %v748, %v767
          %v772 = vadd.f32 %v749, %v767
          %v773 = vadd.f32 %v750, %v767
          %v774 = vadd.f32 %v751, %v767
          %v775 = vadd.f32 %v752, %v767
          %v776 = vadd.f32 %v753, %v767
          %v777 = vadd.f32 %v754, %v767
          %v778 = vadd.f32 %v755, %v767
          %v779 = vadd.f32 %v756, %v767
          %v780 = vadd.f32 %v757, %v767
          %v781 = vadd.f32 %v758, %v767
          %v782 = vadd.f32 %v759, %v767
          %v783 = vadd.f32 %v760, %v767
          %v784 = vadd.f32 %v761, %v767
          %785 = vst [vmem:[%s295] sm:$0xff] %v769
          %786 = vst [vmem:[%s295 + $0x8] sm:$0xff] %v770
          %787 = vst [vmem:[%s295 + $0x10] sm:$0xff] %v771
          %788 = vst [vmem:[%s295 + $0x18] sm:$0xff] %v772
          %789 = vst [vmem:[%s295 + $0x20] sm:$0xff] %v773
          %790 = vst [vmem:[%s295 + $0x28] sm:$0xff] %v774
          %791 = vst [vmem:[%s295 + $0x30] sm:$0xff] %v775
          %792 = vst [vmem:[%s295 + $0x38] sm:$0xff] %v776
          %793 = vst [vmem:[%s295 + $0x40] sm:$0xff] %v777
          %794 = vst [vmem:[%s295 + $0x48] sm:$0xff] %v778
          %795 = vst [vmem:[%s295 + $0x50] sm:$0xff] %v779
          %796 = vst [vmem:[%s295 + $0x58] sm:$0xff] %v780
          %797 = vst [vmem:[%s295 + $0x60] sm:$0xff] %v781
          %798 = vst [vmem:[%s295 + $0x68] sm:$0xff] %v782
          %799 = vst [vmem:[%s295 + $0x70] sm:$0xff] %v783
          %800 = vst [vmem:[%s295 + $0x78] sm:$0xff] %v784
        $region60: #{tpu_custom_call.1} parent=35 // pred_fallthru
          _
        %s801 = sand.u32 %s149, 1
        %s802 = scalar_lea.sflag [#allocation6], %s801
        %s803 = sand.u32 %s149, 1
        %s804 = smul.addr %s803, 128
        %s805 = scalar_lea.vmem [#allocation10], %s804
        // Predicated region
        $region61: #{tpu_custom_call.1} parent=35 // pred_check
          %p806 = pneg %p159
        $region62: #{tpu_custom_call.1} parent=35 // pred_check_branch
          %808 = sbr.rel (%p806) target = $region64
        $region63: #{tpu_custom_call.1} parent=35 // pred_region
          %s809 = smul.u32 16, %s28
          %s811 = ssub.s32 2048, 2048
          %812 = vsyncadd %s802, %s811
          %s813 = smul.addr %s27, 16
          %s814 = sadd.s32 %s809, %s813
          %s815 = smul.addr %s814, 128
          %s816 = scalar_lea.hbm %s4, %s815
          %s817 = sshll.u32 %s805, 4
          %s818 = int_to_ptr.vmem [resolvable:$true] %s817
          %823 = dma.vmem_to_hbm [thread:$0]  %s818, 2048, %s816, %s802, 128, 128, 8
        $region64: #{tpu_custom_call.1} parent=35 // pred_fallthru
          _
      $region36: #{tpu_custom_call.1} parent=5 // pred_fallthru
        _
      %p824 = scmp.le.s32.totalorder 2, %s17
      // Predicated region
      $region65: #{tpu_custom_call.1} parent=5 // pred_check
        %p825 = pneg %p824
      $region66: #{tpu_custom_call.1} parent=5 // pred_check_branch
        %827 = sbr.rel (%p825) target = $region68
      $region67: #{tpu_custom_call.1} parent=5 // pred_region
        %s828 = ssub.s32 %s17, 2
        // Predicated region
        $region69: #{tpu_custom_call.1} parent=67 // pred_check
          %p829 = pneg %p165
        $region70: #{tpu_custom_call.1} parent=67 // pred_check_branch
          %831 = sbr.rel (%p829) target = $region72
        $region71: #{tpu_custom_call.1} parent=67 // pred_region
          %s832 = sand.u32 %s150, 1
          %s833 = scalar_lea.sflag [#allocation6], %s832
          %s834 = sand.u32 %s150, 1
          %s835 = smul.addr %s834, 128
          %s836 = scalar_lea.vmem [#allocation10], %s835
          %837 = dma.done %s833, 2048
        $region72: #{tpu_custom_call.1} parent=67 // pred_fallthru
          _
      $region68: #{tpu_custom_call.1} parent=5 // pred_fallthru
        _
    $region6: #{tpu_custom_call.1} parent=1 // loop_footer
      %s21 = sadd.s32 1, %s17
    $region7: #{tpu_custom_call.1} parent=1 // loop_footer_branch
      %16 = sbr.rel target = $region3
    $region8: #{tpu_custom_call.1} parent=1 // loop_exit
      _
    %838 = vsyncpa [#allocation5], 1
    %s839 = scalar_lea.sflag [#allocation5], 1
    %840 = vsyncpa %s839, 1
    %841 = vsyncpa [#allocation8], 1
    %842 = vsyncpa [#allocation6], 1
    %s843 = scalar_lea.sflag [#allocation6], 1
    %844 = vsyncpa %s843, 1

</llo_original>
